<compile_context>
chip_gen: v5e
topology: v5e:2x2
jax: 0.10.0
libtpu: 0.0.40
codegen_flags: <defaults>
</compile_context>

<pallas_src>
import numpy as np
import jax
import jax.numpy as jnp
from jax import lax
from jax.experimental import pallas as pl
from jax.experimental.pallas import tpu as pltpu

_BIG = 1e30  # finite sentinel for masked entries in the segment softmax


# ---------------------------------------------------------------------------
# Pass 1: per-reaction gate_nn + transform_nn
# ---------------------------------------------------------------------------
def gate_xt_kernel(feats_ref, w1_ref, b1_ref, w2_ref, b2_ref, wt_ref, bt_ref,
                   gate_ref, xt_ref):
    feats = feats_ref[...]                                         # [Rt, H] bf16

    # gate_nn: Linear(H, H//2) -> ReLU -> (Dropout=id) -> Linear(H//2, 1)
    h1 = jnp.maximum(
        jnp.dot(feats, w1_ref[...], preferred_element_type=jnp.float32)
        + b1_ref[...], 0.0)                                        # [Rt, H2] f32
    # N=1 head as VPU multiply + lane reduction (no N=1 MXU matmul); b2 in SMEM.
    gate_ref[...] = (jnp.sum(h1 * w2_ref[...], axis=-1, keepdims=True)
                     + b2_ref[0, 0])                               # [Rt, 1] f32

    # transform_nn: Linear(H, H) -> ReLU -> (Dropout=id)
    xt_ref[...] = jnp.maximum(
        jnp.dot(feats, wt_ref[...], preferred_element_type=jnp.float32)
        + bt_ref[...], 0.0).astype(xt_ref.dtype)                   # [Rt, H] bf16


# ---------------------------------------------------------------------------
# Pass 2: per-gene-tile online segment softmax aggregation
# ---------------------------------------------------------------------------
def gene_agg_kernel(start_ref, nblk_ref, gid_ref, gate_ref, xtt_ref,
                    out_ref, m_sc, l_sc, acc_sc):
    g = pl.program_id(0)
    e = pl.program_id(1)
    e_tile = gid_ref.shape[0]
    g_tile = acc_sc.shape[1]

    @pl.when(e == 0)
    def _init():
        m_sc[...] = jnp.full(m_sc.shape, -_BIG, jnp.float32)
        l_sc[...] = jnp.zeros(l_sc.shape, jnp.float32)
        acc_sc[...] = jnp.zeros(acc_sc.shape, jnp.float32)

    # Only edge blocks that actually contain this gene tile's edges are real;
    # steps past the per-gene-tile range are skipped (and their clamped DMA
    # blocks ignored).
    @pl.when(e < nblk_ref[g])
    def _accumulate():
        gid = gid_ref[...]                                         # [Et, 1] i32
        gate = gate_ref[...]                                       # [Et, 1] f32

        cols = g * g_tile + lax.broadcasted_iota(jnp.int32, (e_tile, g_tile), 1)
        member = gid == cols                                       # [Et, Gt]
        onehot = member.astype(jnp.float32)

        # running per-gene max (torch_geometric.utils.softmax semantics)
        masked = jnp.where(member, gate, -_BIG)                    # [Et, Gt]
        m_prev = m_sc[...]                                         # [1, Gt]
        m_new = jnp.maximum(m_prev, jnp.max(masked, axis=0, keepdims=True))
        corr = jnp.exp(m_prev - m_new)                             # [1, Gt]

        # per-EDGE exp (e_tile transcendentals), not [Et,Gt]-wide
        in_tile = jnp.sum(onehot, axis=1, keepdims=True)           # [Et, 1] 0/1
        m_edge = jnp.sum(onehot * m_new, axis=1, keepdims=True)    # [Et, 1]
        m_edge = jnp.where(in_tile > 0, m_edge, _BIG)              # non-member -> exp()=0
        p = onehot * jnp.exp(gate - m_edge)                        # [Et, Gt]

        l_sc[...] = corr * l_sc[...] + jnp.sum(p, axis=0, keepdims=True)
        # xt already transposed on the host -> natural [H,Et] @ [Et,Gt] matmul,
        # no per-step XLU transpose.
        acc_sc[...] = corr * acc_sc[...] + jnp.dot(
            xtt_ref[...], p.astype(jnp.bfloat16),
            preferred_element_type=jnp.float32)
        m_sc[...] = m_new

    @pl.when(e == pl.num_programs(1) - 1)
    def _finalize():
        inv = pl.reciprocal(l_sc[...] + 1e-16, approx=False)       # [1, Gt]
        out_ref[...] = (acc_sc[...] * inv).astype(out_ref.dtype)


def _rup(x, m):
    return ((x + m - 1) // m) * m


# ---------------------------------------------------------------------------
# Host wrapper
# ---------------------------------------------------------------------------
def gene_mapper_forward(reaction_features, reaction_to_genes, num_genes, params,
                        *, r_tile=256, e_tile=512, g_tile=256):
    """Mirrors GeneMapper.forward (eval mode: dropout = identity)."""
    R, H = reaction_features.shape

    # --- host glue: flatten dict -> edge lists, sort by gene (as in torch) ---
    rxn_ids, gene_ids = [], []
    for rxn_idx, g_indices in reaction_to_genes.items():
        for gid in g_indices:
            rxn_ids.append(rxn_idx)
            gene_ids.append(gid)

    if not rxn_ids:
        # Parity with the torch empty branch: (num_genes, H) zeros.
        return jnp.zeros((num_genes, H), dtype=reaction_features.dtype)

    rxn_ids = np.asarray(rxn_ids, dtype=np.int32)
    gene_ids = np.asarray(gene_ids, dtype=np.int32)
    order = np.argsort(gene_ids, kind="stable")
    rxn_ids, gene_ids = rxn_ids[order], gene_ids[order]

    E = int(rxn_ids.shape[0])
    # PyG AttentionalAggregation default dim_size (matches the torch module).
    dim_size = int(gene_ids.max()) + 1

    w1, b1, w2, b2, wt, bt = params
    H2 = w1.shape[1]

    # --- padding / tile sizing --------------------------------------------
    H_pad = _rup(H, 128)
    H2_pad = _rup(H2, 128)
    r_tile = _rup(min(r_tile, R), 8)
    R_pad = _rup(R, r_tile)
    e_tile = _rup(min(e_tile, E), 128)          # lane dim of the xt^T block
    E_pad = _rup(E, e_tile)
    g_tile = _rup(min(g_tile, dim_size), 128)
    G_pad = _rup(dim_size, g_tile)
    n_r, n_e, n_g = R_pad // r_tile, E_pad // e_tile, G_pad // g_tile

    # --- pass 1 operands -----------------------------------------------------
    feats_r = jnp.zeros((R_pad, H_pad), jnp.bfloat16).at[:R, :H].set(
        reaction_features.astype(jnp.bfloat16))
    w1p = jnp.zeros((H_pad, H2_pad), jnp.bfloat16).at[:H, :H2].set(w1.astype(jnp.bfloat16))
    b1p = jnp.zeros((1, H2_pad), jnp.float32).at[:, :H2].set(b1.astype(jnp.float32))
    w2row = jnp.zeros((1, H2_pad), jnp.float32).at[0, :H2].set(w2[:, 0].astype(jnp.float32))
    b2p = b2.reshape(1, 1).astype(jnp.float32)
    wtp = jnp.zeros((H_pad, H_pad), jnp.bfloat16).at[:H, :H].set(wt.astype(jnp.bfloat16))
    btp = jnp.zeros((1, H_pad), jnp.float32).at[:, :H].set(bt.astype(jnp.float32))

    gate_r, xt_r = pl.pallas_call(
        gate_xt_kernel,
        out_shape=(jax.ShapeDtypeStruct((R_pad, 1), jnp.float32),
                   jax.ShapeDtypeStruct((R_pad, H_pad), jnp.bfloat16)),
        grid_spec=pltpu.PrefetchScalarGridSpec(
            num_scalar_prefetch=0,
            grid=(n_r,),
            in_specs=[
                pl.BlockSpec((r_tile, H_pad), lambda r: (r, 0)),      # feats
                pl.BlockSpec((H_pad, H2_pad), lambda r: (0, 0)),      # w1
                pl.BlockSpec((1, H2_pad), lambda r: (0, 0)),          # b1
                pl.BlockSpec((1, H2_pad), lambda r: (0, 0)),          # w2 row
                pl.BlockSpec(memory_space=pltpu.MemorySpace.SMEM),    # b2 scalar
                pl.BlockSpec((H_pad, H_pad), lambda r: (0, 0)),       # wt
                pl.BlockSpec((1, H_pad), lambda r: (0, 0)),           # bt
            ],
            out_specs=[
                pl.BlockSpec((r_tile, 1), lambda r: (r, 0)),          # gate
                pl.BlockSpec((r_tile, H_pad), lambda r: (r, 0)),      # xt
            ],
        ),
        compiler_params=pltpu.CompilerParams(
            dimension_semantics=("parallel",),
            vmem_limit_bytes=32 * 1024 * 1024,
        ),
    )(feats_r, w1p, b1p, w2row, b2p, wtp, btp)

    # --- host glue between passes (gather per edge + one small transpose) ---
    rxn_pad = jnp.zeros((E_pad,), jnp.int32).at[:E].set(jnp.asarray(rxn_ids))
    gid_col = jnp.full((E_pad, 1), -1, jnp.int32).at[:E, 0].set(jnp.asarray(gene_ids))
    gate_e = jnp.take(gate_r, rxn_pad, axis=0)                      # [E_pad, 1] f32
    # Transpose the small [R_pad, H_pad] once, then gather columns -> [H_pad, E_pad].
    xtt_e = jnp.take(xt_r.T, rxn_pad, axis=1)                       # bf16

    # --- per-gene-tile edge-block ranges (edges are gene-sorted) ------------
    starts = np.zeros((n_g,), np.int32)
    counts = np.zeros((n_g,), np.int32)
    for g in range(n_g):
        lo = int(np.searchsorted(gene_ids, g * g_tile, side="left"))
        hi = int(np.searchsorted(gene_ids, (g + 1) * g_tile, side="left"))
        if hi > lo:
            sb = lo // e_tile
            eb = (hi - 1) // e_tile
            starts[g] = sb
            counts[g] = eb - sb + 1
    max_blk = max(1, int(counts.max()))
    starts = jnp.asarray(starts)
    counts = jnp.asarray(counts)

    def edge_blk(g, e, start_ref, nblk_ref):
        return (jnp.minimum(start_ref[g] + e, n_e - 1), 0)

    def xtt_blk(g, e, start_ref, nblk_ref):
        return (0, jnp.minimum(start_ref[g] + e, n_e - 1))

    out_t = pl.pallas_call(
        gene_agg_kernel,
        out_shape=jax.ShapeDtypeStruct((H_pad, G_pad), jnp.float32),
        grid_spec=pltpu.PrefetchScalarGridSpec(
            num_scalar_prefetch=2,                 # starts, counts -> SMEM
            grid=(n_g, max_blk),                   # gene tiles outer (parallel)
            in_specs=[
                pl.BlockSpec((e_tile, 1), edge_blk),        # gene id per edge
                pl.BlockSpec((e_tile, 1), edge_blk),        # gate per edge
                pl.BlockSpec((H_pad, e_tile), xtt_blk),     # xt^T per edge
            ],
            # gene-on-lanes slab -> lane-dense unmasked stores
            out_specs=pl.BlockSpec((H_pad, g_tile), lambda g, e, s, n: (0, g)),
            scratch_shapes=[
                pltpu.VMEM((1, g_tile), jnp.float32),       # running max
                pltpu.VMEM((1, g_tile), jnp.float32),       # running sum
                pltpu.VMEM((H_pad, g_tile), jnp.float32),   # unnormalized acc
            ],
        ),
        compiler_params=pltpu.CompilerParams(
            dimension_semantics=("parallel", "arbitrary"),
            vmem_limit_bytes=32 * 1024 * 1024,
        ),
    )(starts, counts, gid_col, gate_e, xtt_e)

    # Undo gene-on-lanes layout + padding (layout plumbing only).
    return jnp.transpose(out_t)[:dim_size, :H]


# ---------------------------------------------------------------------------
# Pure-JAX f32 reference + params
# ---------------------------------------------------------------------------
def ref_forward(reaction_features, reaction_to_genes, num_genes, params):
    H = reaction_features.shape[1]
    rxn_ids, gene_ids = [], []
    for rxn_idx, g_indices in reaction_to_genes.items():
        for gid in g_indices:
            rxn_ids.append(rxn_idx)
            gene_ids.append(gid)
    if not rxn_ids:
        return jnp.zeros((num_genes, H), dtype=reaction_features.dtype)
    rxn_ids = np.asarray(rxn_ids, dtype=np.int32)
    gene_ids = np.asarray(gene_ids, dtype=np.int32)
    order = np.argsort(gene_ids, kind="stable")
    rxn_ids, gene_ids = rxn_ids[order], gene_ids[order]
    dim_size = int(gene_ids.max()) + 1
    gene_ids = jnp.asarray(gene_ids)

    w1, b1, w2, b2, wt, bt = params
    feats = reaction_features[jnp.asarray(rxn_ids)]
    h1 = jnp.maximum(feats @ w1 + b1, 0.0)
    gate = (h1 @ w2 + b2)[:, 0]
    xt = jnp.maximum(feats @ wt + bt, 0.0)
    seg_max = jax.ops.segment_max(gate, gene_ids, num_segments=dim_size)
    ex = jnp.exp(gate - seg_max[gene_ids])
    seg_sum = jax.ops.segment_sum(ex, gene_ids, num_segments=dim_size) + 1e-16
    alpha = ex / seg_sum[gene_ids]
    return jax.ops.segment_sum(alpha[:, None] * xt, gene_ids, num_segments=dim_size)


def init_params(key, hidden):
    h2 = hidden // 2
    k1, k2, k3, k4, k5, k6 = jax.random.split(key, 6)
    scale = 0.1
    w1 = scale * jax.random.normal(k1, (hidden, h2), jnp.float32)
    b1 = scale * jax.random.normal(k2, (1, h2), jnp.float32)
    w2 = scale * jax.random.normal(k3, (h2, 1), jnp.float32)
    b2 = scale * jax.random.normal(k4, (1, 1), jnp.float32)
    wt = scale * jax.random.normal(k5, (hidden, hidden), jnp.float32)
    bt = scale * jax.random.normal(k6, (1, hidden), jnp.float32)
    return (w1, b1, w2, b2, wt, bt)


if __name__ == "__main__":
    hidden = 32
    num_reactions = 96
    num_genes = 200

    key = jax.random.PRNGKey(0)
    k_feat, k_param = jax.random.split(key)
    reaction_features = jax.random.normal(k_feat, (num_reactions, hidden), jnp.float32)
    params = init_params(k_param, hidden)

    # Deterministic reaction -> genes mapping (~290 edges): with e_tile=128 and
    # g_tile=128 this yields 2 gene tiles and 3 edge blocks, so each gene tile
    # visits a *different* 2-block edge range (exercising the scalar-prefetched
    # data-dependent index maps, the cross-block online-softmax rescale, and
    # the pl.when range skip).
    reaction_to_genes = {}
    for r in range(num_reactions):
        k = 2 + (r % 3)  # 2..4 genes per reaction
        genes = sorted({(r * 7 + j * 37 + 3) % num_genes for j in range(k)})
        reaction_to_genes[r] = list(genes)

    out = gene_mapper_forward(reaction_features, reaction_to_genes, num_genes,
                              params, r_tile=64, e_tile=128, g_tile=128)
    out = jax.block_until_ready(out)

    ref = jax.block_until_ready(
        ref_forward(reaction_features, reaction_to_genes, num_genes, params))
    # bf16 MXU operands (f32 accumulation) -> relaxed tolerance vs f32 reference.
    np.testing.assert_allclose(np.asarray(out), np.asarray(ref),
                               rtol=5e-2, atol=5e-2)

    print("KERNEL_OK")
</pallas_src>

<mosaic_0001>
module attributes {stable_mosaic.version = 11 : i64} {
  func.func @gate_xt_kernel(%arg0: i32, %arg1: memref<64x128xbf16, #tpu.memory_space<vmem>>, %arg2: memref<128x128xbf16, #tpu.memory_space<vmem>>, %arg3: memref<1x128xf32, #tpu.memory_space<vmem>>, %arg4: memref<1x128xf32, #tpu.memory_space<vmem>>, %arg5: memref<1x1xf32, #tpu.memory_space<smem>>, %arg6: memref<128x128xbf16, #tpu.memory_space<vmem>>, %arg7: memref<1x128xf32, #tpu.memory_space<vmem>>, %arg8: memref<64x1xf32, #tpu.memory_space<vmem>>, %arg9: memref<64x128xbf16, #tpu.memory_space<vmem>>) attributes {dimension_semantics = [#tpu.dimension_semantics<parallel>], iteration_bounds = array<i64: 2>, scalar_prefetch = 0 : i64, scratch_operands = 0 : i64, tpu.core_type = #tpu.core_type<tc>, window_params = [{transform_indices = @transform_0, window_bounds = array<i64: 64, 128>}, {pipeline_mode = #tpu.pipeline_mode<synchronous>, transform_indices = @transform_1, window_bounds = array<i64: 128, 128>}, {pipeline_mode = #tpu.pipeline_mode<synchronous>, transform_indices = @transform_2, window_bounds = array<i64: 1, 128>}, {pipeline_mode = #tpu.pipeline_mode<synchronous>, transform_indices = @transform_3, window_bounds = array<i64: 1, 128>}, {transform_indices = @transform_4, window_bounds = array<i64: 1, 1>}, {pipeline_mode = #tpu.pipeline_mode<synchronous>, transform_indices = @transform_5, window_bounds = array<i64: 128, 128>}, {pipeline_mode = #tpu.pipeline_mode<synchronous>, transform_indices = @transform_6, window_bounds = array<i64: 1, 128>}, {transform_indices = @transform_7, window_bounds = array<i64: 64, 1>}, {transform_indices = @transform_8, window_bounds = array<i64: 64, 128>}]} {
    %c0 = arith.constant 0 : index
    %c0_0 = arith.constant 0 : index
    %0 = vector.load %arg1[%c0, %c0_0] : memref<64x128xbf16, #tpu.memory_space<vmem>>, vector<64x128xbf16>
    %c0_1 = arith.constant 0 : index
    %c0_2 = arith.constant 0 : index
    %1 = vector.load %arg2[%c0_1, %c0_2] : memref<128x128xbf16, #tpu.memory_space<vmem>>, vector<128x128xbf16>
    %cst = arith.constant dense<0.000000e+00> : vector<64x128xf32>
    %2 = tpu.matmul %0, %1, %cst {dimension_numbers = #tpu.dot_dimension_numbers<[1], [0], [0], [1], [0, 0, 1, 1], [], []>} : vector<64x128xbf16>, vector<128x128xbf16>, vector<64x128xf32> -> vector<64x128xf32>
    %c0_3 = arith.constant 0 : index
    %c0_4 = arith.constant 0 : index
    %3 = vector.load %arg3[%c0_3, %c0_4] : memref<1x128xf32, #tpu.memory_space<vmem>>, vector<1x128xf32>
    %4 = vector.broadcast %3 : vector<1x128xf32> to vector<64x128xf32>
    %5 = arith.addf %2, %4 : vector<64x128xf32>
    %cst_5 = arith.constant 0.000000e+00 : f32
    %6 = vector.broadcast %cst_5 : f32 to vector<64x128xf32>
    %7 = arith.maximumf %5, %6 : vector<64x128xf32>
    %c0_6 = arith.constant 0 : index
    %c0_7 = arith.constant 0 : index
    %8 = vector.load %arg4[%c0_6, %c0_7] : memref<1x128xf32, #tpu.memory_space<vmem>>, vector<1x128xf32>
    %9 = vector.broadcast %8 : vector<1x128xf32> to vector<64x128xf32>
    %10 = arith.mulf %7, %9 : vector<64x128xf32>
    %cst_8 = arith.constant dense<0.000000e+00> : vector<64xf32>
    %11 = vector.multi_reduction <add>, %10, %cst_8 [1] : vector<64x128xf32> to vector<64xf32>
    %12 = vector.shape_cast %11 : vector<64xf32> to vector<64x1xf32>
    %c0_9 = arith.constant 0 : index
    %c0_10 = arith.constant 0 : index
    %13 = memref.load %arg5[%c0_9, %c0_10] : memref<1x1xf32, #tpu.memory_space<smem>>
    %14 = vector.broadcast %13 : f32 to vector<64x1xf32>
    %15 = arith.addf %12, %14 : vector<64x1xf32>
    %c0_11 = arith.constant 0 : index
    %c0_12 = arith.constant 0 : index
    %16 = vector.load %arg8[%c0_11, %c0_12] : memref<64x1xf32, #tpu.memory_space<vmem>>, vector<64x1xf32>
    tpu.vector_store %arg8[%c0_11, %c0_12], %15 {strides = array<i32>} : memref<64x1xf32, #tpu.memory_space<vmem>>, vector<64x1xf32>,
    %c0_13 = arith.constant 0 : index
    %c0_14 = arith.constant 0 : index
    %17 = vector.load %arg6[%c0_13, %c0_14] : memref<128x128xbf16, #tpu.memory_space<vmem>>, vector<128x128xbf16>
    %cst_15 = arith.constant dense<0.000000e+00> : vector<64x128xf32>
    %18 = tpu.matmul %0, %17, %cst_15 {dimension_numbers = #tpu.dot_dimension_numbers<[1], [0], [0], [1], [0, 0, 1, 1], [], []>} : vector<64x128xbf16>, vector<128x128xbf16>, vector<64x128xf32> -> vector<64x128xf32>
    %c0_16 = arith.constant 0 : index
    %c0_17 = arith.constant 0 : index
    %19 = vector.load %arg7[%c0_16, %c0_17] : memref<1x128xf32, #tpu.memory_space<vmem>>, vector<1x128xf32>
    %20 = vector.broadcast %19 : vector<1x128xf32> to vector<64x128xf32>
    %21 = arith.addf %18, %20 : vector<64x128xf32>
    %cst_18 = arith.constant 0.000000e+00 : f32
    %22 = vector.broadcast %cst_18 : f32 to vector<64x128xf32>
    %23 = arith.maximumf %21, %22 : vector<64x128xf32>
    %24 = arith.truncf %23 : vector<64x128xf32> to vector<64x128xbf16>
    %c0_19 = arith.constant 0 : index
    %c0_20 = arith.constant 0 : index
    %25 = vector.load %arg9[%c0_19, %c0_20] : memref<64x128xbf16, #tpu.memory_space<vmem>>, vector<64x128xbf16>
    tpu.vector_store %arg9[%c0_19, %c0_20], %24 {strides = array<i32>} : memref<64x128xbf16, #tpu.memory_space<vmem>>, vector<64x128xbf16>,
    return
  }
  func.func @transform_0(%arg0: i32) -> (i32, i32) {
    %c0_i32 = arith.constant 0 : i32
    %c0_i32_0 = arith.constant 0 : i32
    return %arg0, %c0_i32 : i32, i32
  }
  func.func @transform_1(%arg0: i32) -> (i32, i32) {
    %c0_i32 = arith.constant 0 : i32
    %c0_i32_0 = arith.constant 0 : i32
    %c0_i32_1 = arith.constant 0 : i32
    return %c0_i32, %c0_i32_0 : i32, i32
  }
  func.func @transform_2(%arg0: i32) -> (i32, i32) {
    %c0_i32 = arith.constant 0 : i32
    %c0_i32_0 = arith.constant 0 : i32
    %c0_i32_1 = arith.constant 0 : i32
    return %c0_i32, %c0_i32_0 : i32, i32
  }
  func.func @transform_3(%arg0: i32) -> (i32, i32) {
    %c0_i32 = arith.constant 0 : i32
    %c0_i32_0 = arith.constant 0 : i32
    %c0_i32_1 = arith.constant 0 : i32
    return %c0_i32, %c0_i32_0 : i32, i32
  }
  func.func @transform_4(%arg0: i32) -> (i32, i32) {
    %c0_i32 = arith.constant 0 : i32
    %c0_i32_0 = arith.constant 0 : i32
    %c0_i32_1 = arith.constant 0 : i32
    return %c0_i32, %c0_i32_0 : i32, i32
  }
  func.func @transform_5(%arg0: i32) -> (i32, i32) {
    %c0_i32 = arith.constant 0 : i32
    %c0_i32_0 = arith.constant 0 : i32
    %c0_i32_1 = arith.constant 0 : i32
    return %c0_i32, %c0_i32_0 : i32, i32
  }
  func.func @transform_6(%arg0: i32) -> (i32, i32) {
    %c0_i32 = arith.constant 0 : i32
    %c0_i32_0 = arith.constant 0 : i32
    %c0_i32_1 = arith.constant 0 : i32
    return %c0_i32, %c0_i32_0 : i32, i32
  }
  func.func @transform_7(%arg0: i32) -> (i32, i32) {
    %c0_i32 = arith.constant 0 : i32
    %c0_i32_0 = arith.constant 0 : i32
    return %arg0, %c0_i32 : i32, i32
  }
  func.func @transform_8(%arg0: i32) -> (i32, i32) {
    %c0_i32 = arith.constant 0 : i32
    %c0_i32_0 = arith.constant 0 : i32
    return %arg0, %c0_i32 : i32, i32
  }
}

</mosaic_0001>

<llo_original>
// kernel: tpu_custom_call.1
$region0: #{tpu_custom_call.1}
  #allocation0 [shape = 'u32[]', space=smem, size = 0x4, offset = 0x4, fixed_abs, tag = 'smem constant byte address 0x4 - core index']
  #allocation1 [shape = 'u32[72,128]{1,0:T(1,128)}', space=vmem, size = 0x9000, scoped, tag = 'internal scratch']
  #allocation2 [shape = 'f32[1,1]{1,0:T(1,128)S(6)}', space=smem, size = 0x200, scoped, tag = 'scoped memory for tpu_custom_call.1']
  %s0 = inlined_call_operand.hbm [shape: bf16[128,128], index: 0, kind: input, shape index: {}]
  %s1 = inlined_call_operand.hbm [shape: bf16[128,128], index: 1, kind: input, shape index: {}]
  %s2 = inlined_call_operand.vmem [shape: f32[1,128], index: 2, kind: input, shape index: {}]
  %s3 = inlined_call_operand.vmem [shape: f32[1,128], index: 3, kind: input, shape index: {}]
  %s4 = inlined_call_operand.<no memory space> [shape: f32[1,1], index: 4, kind: input, shape index: {}]
  %s5 = inlined_call_operand.hbm [shape: bf16[128,128], index: 5, kind: input, shape index: {}]
  %s6 = inlined_call_operand.vmem [shape: f32[1,128], index: 6, kind: input, shape index: {}]
  %s7 = inlined_call_operand.vmem [shape: f32[128,1], index: 7, kind: output, shape index: {0}]
  %s8 = inlined_call_operand.hbm [shape: bf16[128,128], index: 8, kind: output, shape index: {1}]
  %9 = xla_tuple %s7, %s8
  %s10 = sld [smem:[#allocation0]]
  $region81: #{tpu_custom_call.1} parent=0
    _
  %s12 = ssub.s32 1, %s10
  %s13 = scalar_select 0, %s12, %s10
  %14 = sst [smem:[#allocation2]] %s4
  $region1: #{tpu_custom_call.1} parent=0
    #allocation3 [shape = 'u8[32768]{0}', space=vmem, size = 0x8000, scoped, tag = 'input window, operand 0']
    #allocation4 [shape = 's32[2]{0}', space=sflag, size = 0x8, scoped, tag = 'scoped memory for tpu_custom_call.1']
    #allocation5 [shape = 's32[2]{0}', space=sflag, size = 0x8, scoped, tag = 'scoped memory for tpu_custom_call.1']
    #allocation6 [shape = 'u8[32768]{0}', space=vmem, size = 0x8000, scoped, tag = 'input window, operand 1, single buffered']
    #allocation7 [shape = 's32[1]{0}', space=sflag, size = 0x4, scoped, tag = 'scoped memory for tpu_custom_call.1']
    #allocation8 [shape = 'u8[32768]{0}', space=vmem, size = 0x8000, scoped, tag = 'input window, operand 5, single buffered']
    #allocation9 [shape = 'u8[32768]{0}', space=vmem, size = 0x8000, scoped, tag = 'output window, operand 1']
    %15 = vsyncpa [#allocation4], 0
    %s16 = scalar_lea.sflag [#allocation4], 1
    %17 = vsyncpa %s16, 0
    %18 = vsyncpa [#allocation7], 0
    %19 = vsyncpa [#allocation5], 0
    %s20 = scalar_lea.sflag [#allocation5], 1
    %21 = vsyncpa %s20, 0
    loop: start=0, step=1, limit=4
    $region2: #{tpu_custom_call.1} parent=1 // loop_pre_header
      _
    $region3: #{tpu_custom_call.1} parent=1 // loop_header
      %s23 = sphi 0, %s27
      %p24 = scmp.ge.s32.totalorder %s23, 4
      %s33 = sphi 0, %s35
      %s36 = sphi 0, %s33
      %s37 = sphi 0, %s36
      %s53 = sphi 0, %s37
      %s57 = sphi 0, %s57
      %s59 = sphi 0, %s57
      %s60 = sphi 0, %s59
      %s74 = sphi 0, %s60
      %s78 = sphi 0, %s78
      %s80 = sphi 0, %s78
      %s81 = sphi 0, %s80
      %s95 = sphi 0, %s81
      %s99 = sphi 0, %s99
      %s101 = sphi 0, %s99
      %s102 = sphi 0, %s101
      %s116 = sphi 0, %s102
      %s120 = sphi 0, %s120
      %s122 = sphi 0, %s120
      %s123 = sphi 0, %s122
      %s137 = sphi 0, %s123
      %s141 = sphi 0, %s141
      %s143 = sphi 0, %s141
      %s144 = sphi 0, %s143
      %s158 = sphi 0, %s144
      %s162 = sphi 0, %s162
      %s164 = sphi 0, %s162
      %s165 = sphi 0, %s164
      %s179 = sphi 0, %s165
      %s185 = sphi 0, %s187
      %s188 = sphi 0, %s185
      %s189 = sphi 0, %s188
      %s205 = sphi 0, %s189
      %s211 = sphi 0, %s213
      %s214 = sphi 0, %s211
      %s215 = sphi 0, %s214
      %s231 = sphi 0, %s215
    $region4: #{tpu_custom_call.1} parent=1 // loop_header_branch
      %26 = sbr.rel (%p24) target = $region8
    $region5: #{tpu_custom_call.1} parent=1 // loop_body
      %s28 = ssub.s32 %s23, 1
      %s29 = ssub.s32 %s23, 2
      %s30 = sadd.s32 %s23, 1
      %s31 = ssub.s32 %s23, %s30
      %p32 = scmp.eq.s32.totalorder %s31, 0
      %s34 = sadd.s32 %s33, 1
      %s35 = scalar_select %p32, %s33, %s34
      %p38 = pneg %p32
      %p39 = scmp.eq.s32.totalorder %s23, 1
      %p40 = por %p38, %p39
      %p41 = scmp.ne.s32.totalorder %s33, %s36
      %p42 = scmp.eq.s32.totalorder %s23, 0
      %p43 = por %p41, %p42
      %p44 = scmp.ne.s32.totalorder %s33, %s36
      %p45 = scmp.eq.s32.totalorder %s28, 1
      %p46 = por %p44, %p45
      %p47 = scmp.ne.s32.totalorder %s36, %s37
      %p48 = scmp.eq.s32.totalorder %s28, 0
      %p49 = por %p47, %p48
      %p50 = scmp.ne.s32.totalorder %s36, %s37
      %p51 = scmp.eq.s32.totalorder %s29, 1
      %p52 = por %p50, %p51
      %p54 = scmp.ne.s32.totalorder %s37, %s53
      %p55 = scmp.eq.s32.totalorder %s29, 0
      %p56 = por %p54, %p55
      %s58 = sadd.s32 %s57, 1
      %p61 = scmp.eq.s32.totalorder %s23, 1
      %p62 = scmp.ne.s32.totalorder %s57, %s59
      %p63 = scmp.eq.s32.totalorder %s23, 0
      %p64 = por %p62, %p63
      %p65 = scmp.ne.s32.totalorder %s57, %s59
      %p66 = scmp.eq.s32.totalorder %s28, 1
      %p67 = por %p65, %p66
      %p68 = scmp.ne.s32.totalorder %s59, %s60
      %p69 = scmp.eq.s32.totalorder %s28, 0
      %p70 = por %p68, %p69
      %p71 = scmp.ne.s32.totalorder %s59, %s60
      %p72 = scmp.eq.s32.totalorder %s29, 1
      %p73 = por %p71, %p72
      %p75 = scmp.ne.s32.totalorder %s60, %s74
      %p76 = scmp.eq.s32.totalorder %s29, 0
      %p77 = por %p75, %p76
      %s79 = sadd.s32 %s78, 1
      %p82 = scmp.eq.s32.totalorder %s23, 1
      %p83 = scmp.ne.s32.totalorder %s78, %s80
      %p84 = scmp.eq.s32.totalorder %s23, 0
      %p85 = por %p83, %p84
      %p86 = scmp.ne.s32.totalorder %s78, %s80
      %p87 = scmp.eq.s32.totalorder %s28, 1
      %p88 = por %p86, %p87
      %p89 = scmp.ne.s32.totalorder %s80, %s81
      %p90 = scmp.eq.s32.totalorder %s28, 0
      %p91 = por %p89, %p90
      %p92 = scmp.ne.s32.totalorder %s80, %s81
      %p93 = scmp.eq.s32.totalorder %s29, 1
      %p94 = por %p92, %p93
      %p96 = scmp.ne.s32.totalorder %s81, %s95
      %p97 = scmp.eq.s32.totalorder %s29, 0
      %p98 = por %p96, %p97
      %s100 = sadd.s32 %s99, 1
      %p103 = scmp.eq.s32.totalorder %s23, 1
      %p104 = scmp.ne.s32.totalorder %s99, %s101
      %p105 = scmp.eq.s32.totalorder %s23, 0
      %p106 = por %p104, %p105
      %p107 = scmp.ne.s32.totalorder %s99, %s101
      %p108 = scmp.eq.s32.totalorder %s28, 1
      %p109 = por %p107, %p108
      %p110 = scmp.ne.s32.totalorder %s101, %s102
      %p111 = scmp.eq.s32.totalorder %s28, 0
      %p112 = por %p110, %p111
      %p113 = scmp.ne.s32.totalorder %s101, %s102
      %p114 = scmp.eq.s32.totalorder %s29, 1
      %p115 = por %p113, %p114
      %p117 = scmp.ne.s32.totalorder %s102, %s116
      %p118 = scmp.eq.s32.totalorder %s29, 0
      %p119 = por %p117, %p118
      %s121 = sadd.s32 %s120, 1
      %p124 = scmp.eq.s32.totalorder %s23, 1
      %p125 = scmp.ne.s32.totalorder %s120, %s122
      %p126 = scmp.eq.s32.totalorder %s23, 0
      %p127 = por %p125, %p126
      %p128 = scmp.ne.s32.totalorder %s120, %s122
      %p129 = scmp.eq.s32.totalorder %s28, 1
      %p130 = por %p128, %p129
      %p131 = scmp.ne.s32.totalorder %s122, %s123
      %p132 = scmp.eq.s32.totalorder %s28, 0
      %p133 = por %p131, %p132
      %p134 = scmp.ne.s32.totalorder %s122, %s123
      %p135 = scmp.eq.s32.totalorder %s29, 1
      %p136 = por %p134, %p135
      %p138 = scmp.ne.s32.totalorder %s123, %s137
      %p139 = scmp.eq.s32.totalorder %s29, 0
      %p140 = por %p138, %p139
      %s142 = sadd.s32 %s141, 1
      %p145 = scmp.eq.s32.totalorder %s23, 1
      %p146 = scmp.ne.s32.totalorder %s141, %s143
      %p147 = scmp.eq.s32.totalorder %s23, 0
      %p148 = por %p146, %p147
      %p149 = scmp.ne.s32.totalorder %s141, %s143
      %p150 = scmp.eq.s32.totalorder %s28, 1
      %p151 = por %p149, %p150
      %p152 = scmp.ne.s32.totalorder %s143, %s144
      %p153 = scmp.eq.s32.totalorder %s28, 0
      %p154 = por %p152, %p153
      %p155 = scmp.ne.s32.totalorder %s143, %s144
      %p156 = scmp.eq.s32.totalorder %s29, 1
      %p157 = por %p155, %p156
      %p159 = scmp.ne.s32.totalorder %s144, %s158
      %p160 = scmp.eq.s32.totalorder %s29, 0
      %p161 = por %p159, %p160
      %s163 = sadd.s32 %s162, 1
      %p166 = scmp.eq.s32.totalorder %s23, 1
      %p167 = scmp.ne.s32.totalorder %s162, %s164
      %p168 = scmp.eq.s32.totalorder %s23, 0
      %p169 = por %p167, %p168
      %p170 = scmp.ne.s32.totalorder %s162, %s164
      %p171 = scmp.eq.s32.totalorder %s28, 1
      %p172 = por %p170, %p171
      %p173 = scmp.ne.s32.totalorder %s164, %s165
      %p174 = scmp.eq.s32.totalorder %s28, 0
      %p175 = por %p173, %p174
      %p176 = scmp.ne.s32.totalorder %s164, %s165
      %p177 = scmp.eq.s32.totalorder %s29, 1
      %p178 = por %p176, %p177
      %p180 = scmp.ne.s32.totalorder %s165, %s179
      %p181 = scmp.eq.s32.totalorder %s29, 0
      %p182 = por %p180, %p181
      %s183 = ssub.s32 %s23, %s30
      %p184 = scmp.eq.s32.totalorder %s183, 0
      %s186 = sadd.s32 %s185, 1
      %s187 = scalar_select %p184, %s185, %s186
      %p190 = pneg %p184
      %p191 = scmp.eq.s32.totalorder %s23, 1
      %p192 = por %p190, %p191
      %p193 = scmp.ne.s32.totalorder %s185, %s188
      %p194 = scmp.eq.s32.totalorder %s23, 0
      %p195 = por %p193, %p194
      %p196 = scmp.ne.s32.totalorder %s185, %s188
      %p197 = scmp.eq.s32.totalorder %s28, 1
      %p198 = por %p196, %p197
      %p199 = scmp.ne.s32.totalorder %s188, %s189
      %p200 = scmp.eq.s32.totalorder %s28, 0
      %p201 = por %p199, %p200
      %p202 = scmp.ne.s32.totalorder %s188, %s189
      %p203 = scmp.eq.s32.totalorder %s29, 1
      %p204 = por %p202, %p203
      %p206 = scmp.ne.s32.totalorder %s189, %s205
      %p207 = scmp.eq.s32.totalorder %s29, 0
      %p208 = por %p206, %p207
      %s209 = ssub.s32 %s23, %s30
      %p210 = scmp.eq.s32.totalorder %s209, 0
      %s212 = sadd.s32 %s211, 1
      %s213 = scalar_select %p210, %s211, %s212
      %p216 = pneg %p210
      %p217 = scmp.eq.s32.totalorder %s23, 1
      %p218 = por %p216, %p217
      %p219 = scmp.ne.s32.totalorder %s211, %s214
      %p220 = scmp.eq.s32.totalorder %s23, 0
      %p221 = por %p219, %p220
      %p222 = scmp.ne.s32.totalorder %s211, %s214
      %p223 = scmp.eq.s32.totalorder %s28, 1
      %p224 = por %p222, %p223
      %p225 = scmp.ne.s32.totalorder %s214, %s215
      %p226 = scmp.eq.s32.totalorder %s28, 0
      %p227 = por %p225, %p226
      %p228 = scmp.ne.s32.totalorder %s214, %s215
      %p229 = scmp.eq.s32.totalorder %s29, 1
      %p230 = por %p228, %p229
      %p232 = scmp.ne.s32.totalorder %s215, %s231
      %p233 = scmp.eq.s32.totalorder %s29, 0
      %p234 = por %p232, %p233
      %p235 = scmp.le.s32.totalorder 1, %s23
      %p236 = scmp.lt.s32.totalorder %s23, 3
      %p237 = pnand %p235, %p236
      %p238 = pneg %p237
      // Predicated region
      $region9: #{tpu_custom_call.1} parent=5 // pred_check
        _
      $region10: #{tpu_custom_call.1} parent=5 // pred_check_branch
        %240 = sbr.rel (%p237) target = $region12
      $region11: #{tpu_custom_call.1} parent=5 // pred_region
        %s241 = ssub.s32 %s23, 1
        // Predicated region
        $region13: #{tpu_custom_call.1} parent=11 // pred_check
          %p242 = pneg %p70
        $region14: #{tpu_custom_call.1} parent=11 // pred_check_branch
          %244 = sbr.rel (%p242) target = $region16
        $region15: #{tpu_custom_call.1} parent=11 // pred_region
          %246 = vsyncadd [#allocation7], 0
          %s247 = sshll.u32 %s1, 4
          %s248 = int_to_ptr.hbm [resolvable:$true] %s247
          %s249 = sshll.u32 [#allocation6], 4
          %s250 = int_to_ptr.vmem [resolvable:$true] %s249
          %255 = dma.hbm_to_vmem [thread:$0]  %s248, 1024, %s250, [#allocation7], 64, 64, 4
        $region16: #{tpu_custom_call.1} parent=11 // pred_fallthru
          _
        // Predicated region
        $region17: #{tpu_custom_call.1} parent=11 // pred_check
          %p256 = pneg %p91
        $region18: #{tpu_custom_call.1} parent=11 // pred_check_branch
          %258 = sbr.rel (%p256) target = $region20
        $region19: #{tpu_custom_call.1} parent=11 // pred_region
          _
        $region20: #{tpu_custom_call.1} parent=11 // pred_fallthru
          _
        // Predicated region
        $region21: #{tpu_custom_call.1} parent=11 // pred_check
          %p259 = pneg %p112
        $region22: #{tpu_custom_call.1} parent=11 // pred_check_branch
          %261 = sbr.rel (%p259) target = $region24
        $region23: #{tpu_custom_call.1} parent=11 // pred_region
          _
        $region24: #{tpu_custom_call.1} parent=11 // pred_fallthru
          _
        // Predicated region
        $region25: #{tpu_custom_call.1} parent=11 // pred_check
          %p262 = pneg %p133
        $region26: #{tpu_custom_call.1} parent=11 // pred_check_branch
          %264 = sbr.rel (%p262) target = $region28
        $region27: #{tpu_custom_call.1} parent=11 // pred_region
          _
        $region28: #{tpu_custom_call.1} parent=11 // pred_fallthru
          _
        // Predicated region
        $region29: #{tpu_custom_call.1} parent=11 // pred_check
          %p265 = pneg %p154
        $region30: #{tpu_custom_call.1} parent=11 // pred_check_branch
          %267 = sbr.rel (%p265) target = $region32
        $region31: #{tpu_custom_call.1} parent=11 // pred_region
          %269 = vsyncadd [#allocation7], 0
          %s270 = sshll.u32 %s5, 4
          %s271 = int_to_ptr.hbm [resolvable:$true] %s270
          %s272 = sshll.u32 [#allocation8], 4
          %s273 = int_to_ptr.vmem [resolvable:$true] %s272
          %278 = dma.hbm_to_vmem [thread:$0]  %s271, 1024, %s273, [#allocation7], 64, 64, 4
        $region32: #{tpu_custom_call.1} parent=11 // pred_fallthru
          _
        // Predicated region
        $region33: #{tpu_custom_call.1} parent=11 // pred_check
          %p279 = pneg %p175
        $region34: #{tpu_custom_call.1} parent=11 // pred_check_branch
          %281 = sbr.rel (%p279) target = $region36
        $region35: #{tpu_custom_call.1} parent=11 // pred_region
          _
        $region36: #{tpu_custom_call.1} parent=11 // pred_fallthru
          _
      $region12: #{tpu_custom_call.1} parent=5 // pred_fallthru
        _
      %p282 = scmp.lt.s32.totalorder %s23, 2
      // Predicated region
      $region37: #{tpu_custom_call.1} parent=5 // pred_check
        %p283 = pneg %p282
      $region38: #{tpu_custom_call.1} parent=5 // pred_check_branch
        %285 = sbr.rel (%p283) target = $region40
      $region39: #{tpu_custom_call.1} parent=5 // pred_region
        // Predicated region
        $region41: #{tpu_custom_call.1} parent=39 // pred_check
          %p286 = pneg %p43
        $region42: #{tpu_custom_call.1} parent=39 // pred_check_branch
          %288 = sbr.rel (%p286) target = $region44
        $region43: #{tpu_custom_call.1} parent=39 // pred_region
          %s289 = sand.u32 %s33, 1
          %s290 = scalar_lea.sflag [#allocation4], %s289
          %s291 = sand.u32 %s33, 1
          %s292 = smul.addr %s291, 32
          %s293 = scalar_lea.vmem [#allocation3], %s292
          %s294 = smul.u32 8, %s23
          %296 = vsyncadd %s290, 0
          %s297 = smul.addr %s294, 4
          %s298 = scalar_lea.hbm %s0, %s297
          %s299 = sshll.u32 %s298, 4
          %s300 = int_to_ptr.hbm [resolvable:$true] %s299
          %s301 = sshll.u32 %s293, 4
          %s302 = int_to_ptr.vmem [resolvable:$true] %s301
          %307 = dma.hbm_to_vmem [thread:$0]  %s300, 512, %s302, %s290, 64, 64, 4
        $region44: #{tpu_custom_call.1} parent=39 // pred_fallthru
          _
      $region40: #{tpu_custom_call.1} parent=5 // pred_fallthru
        _
      %p308 = scmp.le.s32.totalorder 1, %s23
      %p309 = scmp.lt.s32.totalorder %s23, 3
      %p310 = pnand %p308, %p309
      %p311 = pneg %p310
      // Predicated region
      $region45: #{tpu_custom_call.1} parent=5 // pred_check
        _
      $region46: #{tpu_custom_call.1} parent=5 // pred_check_branch
        %313 = sbr.rel (%p310) target = $region48
      $region47: #{tpu_custom_call.1} parent=5 // pred_region
        %s314 = ssub.s32 %s23, 1
        %s315 = sand.u32 %s36, 1
        %s316 = scalar_lea.sflag [#allocation4], %s315
        %s317 = sand.u32 %s36, 1
        %s318 = smul.addr %s317, 32
        %s319 = scalar_lea.vmem [#allocation3], %s318
        // Predicated region
        $region49: #{tpu_custom_call.1} parent=47 // pred_check
          %p320 = pneg %p49
        $region50: #{tpu_custom_call.1} parent=47 // pred_check_branch
          %322 = sbr.rel (%p320) target = $region52
        $region51: #{tpu_custom_call.1} parent=47 // pred_region
          %324 = dma.done %s316, 512
        $region52: #{tpu_custom_call.1} parent=47 // pred_fallthru
          _
        // Predicated region
        $region53: #{tpu_custom_call.1} parent=47 // pred_check
          %p325 = pneg %p70
        $region54: #{tpu_custom_call.1} parent=47 // pred_check_branch
          %327 = sbr.rel (%p325) target = $region56
        $region55: #{tpu_custom_call.1} parent=47 // pred_region
          %329 = dma.done [#allocation7], 1024
        $region56: #{tpu_custom_call.1} parent=47 // pred_fallthru
          _
        // Predicated region
        $region57: #{tpu_custom_call.1} parent=47 // pred_check
          %p330 = pneg %p154
        $region58: #{tpu_custom_call.1} parent=47 // pred_check_branch
          %332 = sbr.rel (%p330) target = $region60
        $region59: #{tpu_custom_call.1} parent=47 // pred_region
          %334 = dma.done [#allocation7], 1024
        $region60: #{tpu_custom_call.1} parent=47 // pred_fallthru
          _
        %s335 = sand.u32 %s36, 1
        %s336 = scalar_lea.sflag [#allocation4], %s335
        %s337 = sand.u32 %s36, 1
        %s338 = smul.addr %s337, 32
        %s339 = scalar_lea.vmem [#allocation3], %s338
        %p340 = pneg %p49
        %p341 = pneg %p46
        %p342 = pneg %p70
        %p343 = pneg %p67
        %p344 = pneg %p91
        %p345 = pneg %p88
        %p346 = pneg %p112
        %p347 = pneg %p109
        %p348 = pneg %p133
        %p349 = pneg %p130
        %p350 = pneg %p154
        %p351 = pneg %p151
        %p352 = pneg %p175
        %p353 = pneg %p172
        %p354 = pneg %p201
        %p355 = pneg %p198
        %s356 = smul.u32 8, %s28
        %p357 = scmp.lt.s32.totalorder %s356, 15
        %s358 = scalar_select %p357, %s356, 15
        %s359 = smul.addr %s358, 8
        %s360 = scalar_lea.vmem %s7, %s359
        %p361 = pneg %p227
        %p362 = pneg %p224
        %s363 = sand.u32 %s214, 1
        %s364 = scalar_lea.sflag [#allocation5], %s363
        %s365 = sand.u32 %s214, 1
        %s366 = smul.addr %s365, 32
        %s367 = scalar_lea.vmem [#allocation9], %s366
        %s368 = smul.u32 8, %s28
        %s369 = smul.u32 8, %s28
        %p370 = scmp.lt.s32.totalorder %s369, 15
        %s371 = scalar_select %p370, %s369, 15
        %s372 = smul.addr %s371, 8
        %s373 = scalar_lea.vmem %s7, %s372
        %s374 = smul.u32 8, %s28
        %s375 = smul.u32 8, %s28
        %v376 = vld [vmem:[%s319] sm:$0xf]
        %v377 = vld [vmem:[%s319 + $0x4] sm:$0xf]
        %v378 = vld [vmem:[%s319 + $0x8] sm:$0xf]
        %v379 = vld [vmem:[%s319 + $0xc] sm:$0xf]
        %v380 = vld [vmem:[%s319 + $0x10] sm:$0xf]
        %v381 = vld [vmem:[%s319 + $0x14] sm:$0xf]
        %v382 = vld [vmem:[%s319 + $0x18] sm:$0xf]
        %v383 = vld [vmem:[%s319 + $0x1c] sm:$0xf]
        %v384 = vld [vmem:[#allocation6] sm:$0xf]
        %v385 = vld [vmem:[#allocation6 + $0x4] sm:$0xf]
        %v386 = vld [vmem:[#allocation6 + $0x8] sm:$0xf]
        %v387 = vld [vmem:[#allocation6 + $0xc] sm:$0xf]
        %v388 = vld [vmem:[#allocation6 + $0x10] sm:$0xf]
        %v389 = vld [vmem:[#allocation6 + $0x14] sm:$0xf]
        %v390 = vld [vmem:[#allocation6 + $0x18] sm:$0xf]
        %v391 = vld [vmem:[#allocation6 + $0x1c] sm:$0xf]
        %v392 = vld [vmem:[#allocation6 + $0x20] sm:$0xf]
        %v393 = vld [vmem:[#allocation6 + $0x24] sm:$0xf]
        %v394 = vld [vmem:[#allocation6 + $0x28] sm:$0xf]
        %v395 = vld [vmem:[#allocation6 + $0x2c] sm:$0xf]
        %v396 = vld [vmem:[#allocation6 + $0x30] sm:$0xf]
        %v397 = vld [vmem:[#allocation6 + $0x34] sm:$0xf]
        %v398 = vld [vmem:[#allocation6 + $0x38] sm:$0xf]
        %v399 = vld [vmem:[#allocation6 + $0x3c] sm:$0xf]
        %v400 = vld [vmem:[%s2] sm:$0x1]
        %v402 = vperm.slane %v400, 0
        %v412 = vunpack.c.l.b16 %v376
        %v413 = vunpack.c.l.b16 %v377
        %v414 = vunpack.c.l.b16 %v378
        %v415 = vunpack.c.l.b16 %v379
        %v416 = vunpack.c.l.b16 %v380
        %v417 = vunpack.c.l.b16 %v381
        %v418 = vunpack.c.l.b16 %v382
        %v419 = vunpack.c.l.b16 %v383
        %v420 = vpack.c.b16 %v413, %v412
        %v421 = vpack.c.b16 %v415, %v414
        %v422 = vpack.c.b16 %v417, %v416
        %v423 = vpack.c.b16 %v419, %v418
        %v444 = vunpack.c.l.b16 %v384
        %v445 = vunpack.c.l.b16 %v385
        %v446 = vunpack.c.l.b16 %v386
        %v447 = vunpack.c.l.b16 %v387
        %v448 = vunpack.c.l.b16 %v388
        %v449 = vunpack.c.l.b16 %v389
        %v450 = vunpack.c.l.b16 %v390
        %v451 = vunpack.c.l.b16 %v391
        %v452 = vunpack.c.l.b16 %v392
        %v453 = vunpack.c.l.b16 %v393
        %v454 = vunpack.c.l.b16 %v394
        %v455 = vunpack.c.l.b16 %v395
        %v456 = vunpack.c.l.b16 %v396
        %v457 = vunpack.c.l.b16 %v397
        %v458 = vunpack.c.l.b16 %v398
        %v459 = vunpack.c.l.b16 %v399
        %v460 = vpack.c.b16 %v445, %v444
        %v461 = vpack.c.b16 %v447, %v446
        %v462 = vpack.c.b16 %v449, %v448
        %v463 = vpack.c.b16 %v451, %v450
        %v464 = vpack.c.b16 %v453, %v452
        %v465 = vpack.c.b16 %v455, %v454
        %v466 = vpack.c.b16 %v457, %v456
        %v467 = vpack.c.b16 %v459, %v458
        %476 = vmatpush.bf16.msra.mxu0 %v467
        %477 = vmatpush.bf16.msra.mxu0 %v466
        %478 = vmatpush.bf16.msra.mxu0 %v465
        %479 = vmatpush.bf16.msra.mxu0 %v464
        %480 = vmatpush.bf16.msra.mxu0 %v463
        %481 = vmatpush.bf16.msra.mxu0 %v462
        %482 = vmatpush.bf16.msra.mxu0 %v461
        %483 = vmatpush.bf16.msra.mxu0 %v460
        %484 = vmatmul.bf16.gmra.mxu0 %v420
        %v485 = vpop.f32.mrf.mxu0
        %v486 = vadd.f32 %v402, %v485
        %v487 = vpop.f32.mrf.mxu0
        %v488 = vadd.f32 %v402, %v487
        %489 = vmatmul.bf16.gmra.mxu0 %v421
        %v490 = vpop.f32.mrf.mxu0
        %v491 = vadd.f32 %v402, %v490
        %v492 = vpop.f32.mrf.mxu0
        %v493 = vadd.f32 %v402, %v492
        %494 = vmatmul.bf16.gmra.mxu0 %v422
        %v495 = vpop.f32.mrf.mxu0
        %v496 = vadd.f32 %v402, %v495
        %v497 = vpop.f32.mrf.mxu0
        %v498 = vadd.f32 %v402, %v497
        %499 = vmatmul.bf16.gmra.mxu0 %v423
        %v500 = vpop.f32.mrf.mxu0
        %v501 = vadd.f32 %v402, %v500
        %v502 = vpop.f32.mrf.mxu0
        %v503 = vadd.f32 %v402, %v502
        %504 = vdwg.mxu0
        %v505 = vmax.f32 %v486, 0.0
        %v506 = vmax.f32 %v488, 0.0
        %v507 = vmax.f32 %v491, 0.0
        %v508 = vmax.f32 %v493, 0.0
        %v509 = vmax.f32 %v496, 0.0
        %v510 = vmax.f32 %v498, 0.0
        %v511 = vmax.f32 %v501, 0.0
        %v512 = vmax.f32 %v503, 0.0
        %v513 = vld [vmem:[%s3] sm:$0x1]
        %v515 = vperm.slane %v513, 0
        %v517 = vmul.f32 %v505, %v515
        %v518 = vmul.f32 %v506, %v515
        %v519 = vmul.f32 %v507, %v515
        %v520 = vmul.f32 %v508, %v515
        %v521 = vmul.f32 %v509, %v515
        %v522 = vmul.f32 %v510, %v515
        %v523 = vmul.f32 %v511, %v515
        %v524 = vmul.f32 %v512, %v515
        %525 = vadd.xlane.f32.xlu0 %v517
        %v526 = vpop.xlane.xlu0 %525
        %527 = vadd.xlane.f32.xlu0 %v518
        %v528 = vpop.xlane.xlu0 %527
        %529 = vadd.xlane.f32.xlu0 %v519
        %v530 = vpop.xlane.xlu0 %529
        %531 = vadd.xlane.f32.xlu0 %v520
        %v532 = vpop.xlane.xlu0 %531
        %533 = vadd.xlane.f32.xlu0 %v521
        %v534 = vpop.xlane.xlu0 %533
        %535 = vadd.xlane.f32.xlu0 %v522
        %v536 = vpop.xlane.xlu0 %535
        %537 = vadd.xlane.f32.xlu0 %v523
        %v538 = vpop.xlane.xlu0 %537
        %539 = vadd.xlane.f32.xlu0 %v524
        %v540 = vpop.xlane.xlu0 %539
        %s541 = sld [smem:[#allocation2]]
        %v542 = vstv %s541
        %v543 = vadd.f32 %v526, %v542
        %v544 = vadd.f32 %v528, %v542
        %v545 = vadd.f32 %v530, %v542
        %v546 = vadd.f32 %v532, %v542
        %v547 = vadd.f32 %v534, %v542
        %v548 = vadd.f32 %v536, %v542
        %v549 = vadd.f32 %v538, %v542
        %v550 = vadd.f32 %v540, %v542
        %vm551 = vcmask 7168
        %552 = vst.msk [vmem:[%s373] sm:$0xff] %vm551, %v543
        %553 = vst.msk [vmem:[%s373 + $0x8] sm:$0xff] %vm551, %v544
        %554 = vst.msk [vmem:[%s373 + $0x10] sm:$0xff] %vm551, %v545
        %555 = vst.msk [vmem:[%s373 + $0x18] sm:$0xff] %vm551, %v546
        %556 = vst.msk [vmem:[%s373 + $0x20] sm:$0xff] %vm551, %v547
        %557 = vst.msk [vmem:[%s373 + $0x28] sm:$0xff] %vm551, %v548
        %558 = vst.msk [vmem:[%s373 + $0x30] sm:$0xff] %vm551, %v549
        %559 = vst.msk [vmem:[%s373 + $0x38] sm:$0xff] %vm551, %v550
        %v560 = vld [vmem:[#allocation8] sm:$0xf]
        %v561 = vld [vmem:[#allocation8 + $0x4] sm:$0xf]
        %v562 = vld [vmem:[#allocation8 + $0x8] sm:$0xf]
        %v563 = vld [vmem:[#allocation8 + $0xc] sm:$0xf]
        %v564 = vld [vmem:[#allocation8 + $0x10] sm:$0xf]
        %v565 = vld [vmem:[#allocation8 + $0x14] sm:$0xf]
        %v566 = vld [vmem:[#allocation8 + $0x18] sm:$0xf]
        %v567 = vld [vmem:[#allocation8 + $0x1c] sm:$0xf]
        %v568 = vld [vmem:[#allocation8 + $0x20] sm:$0xf]
        %v569 = vld [vmem:[#allocation8 + $0x24] sm:$0xf]
        %v570 = vld [vmem:[#allocation8 + $0x28] sm:$0xf]
        %v571 = vld [vmem:[#allocation8 + $0x2c] sm:$0xf]
        %v572 = vld [vmem:[#allocation8 + $0x30] sm:$0xf]
        %v573 = vld [vmem:[#allocation8 + $0x34] sm:$0xf]
        %v574 = vld [vmem:[#allocation8 + $0x38] sm:$0xf]
        %v575 = vld [vmem:[#allocation8 + $0x3c] sm:$0xf]
        %v576 = vld [vmem:[%s6] sm:$0x1]
        %v578 = vperm.slane %v576, 0
        %v596 = vunpack.c.l.b16 %v560
        %v597 = vunpack.c.l.b16 %v561
        %v598 = vunpack.c.l.b16 %v562
        %v599 = vunpack.c.l.b16 %v563
        %v600 = vunpack.c.l.b16 %v564
        %v601 = vunpack.c.l.b16 %v565
        %v602 = vunpack.c.l.b16 %v566
        %v603 = vunpack.c.l.b16 %v567
        %v604 = vunpack.c.l.b16 %v568
        %v605 = vunpack.c.l.b16 %v569
        %v606 = vunpack.c.l.b16 %v570
        %v607 = vunpack.c.l.b16 %v571
        %v608 = vunpack.c.l.b16 %v572
        %v609 = vunpack.c.l.b16 %v573
        %v610 = vunpack.c.l.b16 %v574
        %v611 = vunpack.c.l.b16 %v575
        %v612 = vpack.c.b16 %v597, %v596
        %v613 = vpack.c.b16 %v599, %v598
        %v614 = vpack.c.b16 %v601, %v600
        %v615 = vpack.c.b16 %v603, %v602
        %v616 = vpack.c.b16 %v605, %v604
        %v617 = vpack.c.b16 %v607, %v606
        %v618 = vpack.c.b16 %v609, %v608
        %v619 = vpack.c.b16 %v611, %v610
        %628 = vmatpush.bf16.msra.mxu0 %v619
        %629 = vmatpush.bf16.msra.mxu0 %v618
        %630 = vmatpush.bf16.msra.mxu0 %v617
        %631 = vmatpush.bf16.msra.mxu0 %v616
        %632 = vmatpush.bf16.msra.mxu0 %v615
        %633 = vmatpush.bf16.msra.mxu0 %v614
        %634 = vmatpush.bf16.msra.mxu0 %v613
        %635 = vmatpush.bf16.msra.mxu0 %v612
        %636 = vmatmul.bf16.gmra.mxu0 %v420
        %v637 = vpop.f32.mrf.mxu0
        %v638 = vadd.f32 %v578, %v637
        %v639 = vpop.f32.mrf.mxu0
        %v640 = vadd.f32 %v578, %v639
        %641 = vmatmul.bf16.gmra.mxu0 %v421
        %v642 = vpop.f32.mrf.mxu0
        %v643 = vadd.f32 %v578, %v642
        %v644 = vpop.f32.mrf.mxu0
        %v645 = vadd.f32 %v578, %v644
        %646 = vmatmul.bf16.gmra.mxu0 %v422
        %v647 = vpop.f32.mrf.mxu0
        %v648 = vadd.f32 %v578, %v647
        %v649 = vpop.f32.mrf.mxu0
        %v650 = vadd.f32 %v578, %v649
        %651 = vmatmul.bf16.gmra.mxu0 %v423
        %v652 = vpop.f32.mrf.mxu0
        %v653 = vadd.f32 %v578, %v652
        %v654 = vpop.f32.mrf.mxu0
        %v655 = vadd.f32 %v578, %v654
        %656 = vdwg.mxu0
        %v657 = vmax.f32 %v638, 0.0
        %v658 = vmax.f32 %v640, 0.0
        %v659 = vmax.f32 %v643, 0.0
        %v660 = vmax.f32 %v645, 0.0
        %v661 = vmax.f32 %v648, 0.0
        %v662 = vmax.f32 %v650, 0.0
        %v663 = vmax.f32 %v653, 0.0
        %v664 = vmax.f32 %v655, 0.0
        %v665 = vpack.c.bf16 %v657, %v657
        %v666 = vpack.c.bf16 %v658, %v658
        %v667 = vpack.c.bf16 %v659, %v659
        %v668 = vpack.c.bf16 %v660, %v660
        %v669 = vpack.c.bf16 %v661, %v661
        %v670 = vpack.c.bf16 %v662, %v662
        %v671 = vpack.c.bf16 %v663, %v663
        %v672 = vpack.c.bf16 %v664, %v664
        %673 = vst [vmem:[%s367] sm:$0xf] %v665
        %674 = vst [vmem:[%s367 + $0x4] sm:$0xf] %v666
        %675 = vst [vmem:[%s367 + $0x8] sm:$0xf] %v667
        %676 = vst [vmem:[%s367 + $0xc] sm:$0xf] %v668
        %677 = vst [vmem:[%s367 + $0x10] sm:$0xf] %v669
        %678 = vst [vmem:[%s367 + $0x14] sm:$0xf] %v670
        %679 = vst [vmem:[%s367 + $0x18] sm:$0xf] %v671
        %680 = vst [vmem:[%s367 + $0x1c] sm:$0xf] %v672
        %s681 = smul.u32 8, %s28
        %p682 = scmp.lt.s32.totalorder %s681, 15
        %s683 = scalar_select %p682, %s681, 15
        %s684 = smul.addr %s683, 8
        %s685 = scalar_lea.vmem %s7, %s684
        %s686 = sand.u32 %s214, 1
        %s687 = scalar_lea.sflag [#allocation5], %s686
        %s688 = sand.u32 %s214, 1
        %s689 = smul.addr %s688, 32
        %s690 = scalar_lea.vmem [#allocation9], %s689
        // Predicated region
        $region61: #{tpu_custom_call.1} parent=47 // pred_check
          %p691 = pneg %p198
        $region62: #{tpu_custom_call.1} parent=47 // pred_check_branch
          %693 = sbr.rel (%p691) target = $region64
        $region63: #{tpu_custom_call.1} parent=47 // pred_region
          %s694 = smul.u32 8, %s28
        $region64: #{tpu_custom_call.1} parent=47 // pred_fallthru
          _
        // Predicated region
        $region65: #{tpu_custom_call.1} parent=47 // pred_check
          %p695 = pneg %p224
        $region66: #{tpu_custom_call.1} parent=47 // pred_check_branch
          %697 = sbr.rel (%p695) target = $region68
        $region67: #{tpu_custom_call.1} parent=47 // pred_region
          %s698 = smul.u32 8, %s28
          %700 = vsyncadd %s687, 0
          %s701 = smul.addr %s698, 4
          %s702 = scalar_lea.hbm %s8, %s701
          %s703 = sshll.u32 %s690, 4
          %s704 = int_to_ptr.vmem [resolvable:$true] %s703
          %s705 = sshll.u32 %s702, 4
          %s706 = int_to_ptr.hbm [resolvable:$true] %s705
          %711 = dma.vmem_to_hbm [thread:$0]  %s704, 512, %s706, %s687, 64, 64, 4
        $region68: #{tpu_custom_call.1} parent=47 // pred_fallthru
          _
      $region48: #{tpu_custom_call.1} parent=5 // pred_fallthru
        _
      %p712 = scmp.le.s32.totalorder 2, %s23
      // Predicated region
      $region69: #{tpu_custom_call.1} parent=5 // pred_check
        %p713 = pneg %p712
      $region70: #{tpu_custom_call.1} parent=5 // pred_check_branch
        %715 = sbr.rel (%p713) target = $region72
      $region71: #{tpu_custom_call.1} parent=5 // pred_region
        %s716 = ssub.s32 %s23, 2
        // Predicated region
        $region73: #{tpu_custom_call.1} parent=71 // pred_check
          %p717 = pneg %p204
        $region74: #{tpu_custom_call.1} parent=71 // pred_check_branch
          %719 = sbr.rel (%p717) target = $region76
        $region75: #{tpu_custom_call.1} parent=71 // pred_region
          %s720 = smul.u32 8, %s29
          %p721 = scmp.lt.s32.totalorder %s720, 15
          %s722 = scalar_select %p721, %s720, 15
          %s723 = smul.addr %s722, 8
          %s724 = scalar_lea.vmem %s7, %s723
        $region76: #{tpu_custom_call.1} parent=71 // pred_fallthru
          _
        // Predicated region
        $region77: #{tpu_custom_call.1} parent=71 // pred_check
          %p725 = pneg %p230
        $region78: #{tpu_custom_call.1} parent=71 // pred_check_branch
          %727 = sbr.rel (%p725) target = $region80
        $region79: #{tpu_custom_call.1} parent=71 // pred_region
          %s728 = sand.u32 %s215, 1
          %s729 = scalar_lea.sflag [#allocation5], %s728
          %s730 = sand.u32 %s215, 1
          %s731 = smul.addr %s730, 32
          %s732 = scalar_lea.vmem [#allocation9], %s731
          %734 = dma.done %s729, 512
        $region80: #{tpu_custom_call.1} parent=71 // pred_fallthru
          _
      $region72: #{tpu_custom_call.1} parent=5 // pred_fallthru
        _
    $region6: #{tpu_custom_call.1} parent=1 // loop_footer
      %s27 = sadd.s32 1, %s23
    $region7: #{tpu_custom_call.1} parent=1 // loop_footer_branch
      %22 = sbr.rel target = $region3
    $region8: #{tpu_custom_call.1} parent=1 // loop_exit
      _
    %735 = vsyncpa [#allocation4], 1
    %s736 = scalar_lea.sflag [#allocation4], 1
    %737 = vsyncpa %s736, 1
    %738 = vsyncpa [#allocation7], 1
    %739 = vsyncpa [#allocation5], 1
    %s740 = scalar_lea.sflag [#allocation5], 1
    %741 = vsyncpa %s740, 1

</llo_original>
